<compile_context>
chip_gen: v6e
topology: v6e:2x2x1
jax: 0.10.0
libtpu: 0.0.40
codegen_flags: <defaults>
</compile_context>

<pallas_src>
import functools

import jax
import jax.numpy as jnp
from jax.experimental import pallas as pl
from jax.experimental.pallas import tpu as pltpu


LN_EPS = 1e-5        # torch nn.LayerNorm default eps
L2_EPS_SQ = 1e-24    # (1e-12)^2: clamp on ||y||^2 == F.normalize clamp_min(1e-12) on ||y||

# Conservative per-kernel VMEM budget: v7x has the smallest VMEM (64 MiB
# physical / 32 MiB default scoped); ~40 MiB for double-buffered input blocks +
# resident weights + scratch keeps every generation (v5e/v6e/v7x) happy.
_VMEM_BUDGET = 40 * 1024 * 1024


def _round_up(x: int, m: int) -> int:
    return ((x + m - 1) // m) * m


# --------------------------- shared on-chip math ----------------------------- #

def _project(y, w_refs, standardize_input):
    """LayerNorm(no affine) + (Linear(bias=False) -> L2 normalize dim=1)*n.

    y is (bb, D0) f32; intermediates never leave vregs/VMEM.
    """
    if standardize_input:
        mean = jnp.mean(y, axis=-1, keepdims=True)
        yc = y - mean
        var = jnp.mean(yc * yc, axis=-1, keepdims=True)
        y = yc * jax.lax.rsqrt(var + LN_EPS)                     # rsqrt -> EUP slot
    for w_ref in w_refs:
        # Weights pre-transposed to (in, out): plain MXU matmul, f32 accumulate.
        y = jnp.dot(y, w_ref[...].astype(jnp.float32),
                    preferred_element_type=jnp.float32)
        sumsq = jnp.sum(y * y, axis=1, keepdims=True)
        y = y * jax.lax.rsqrt(jnp.maximum(sumsq, L2_EPS_SQ))     # single rsqrt, no divide
    return y


# --------------------------- kernels ----------------------------------------- #

def _mean_pool_kernel(x_ref, *refs, n_layers, standardize_input, seq_len, seq_tile):
    """grid = (batch_tiles, seq_chunks).  Streams x in (bb, ts, D0) chunks,
    accumulates the token sum in VMEM scratch, runs the head + single store
    only on the last chunk (output block resident across the 'arbitrary' axis)."""
    w_refs = refs[:n_layers]
    o_ref = refs[n_layers]
    acc_ref = refs[n_layers + 1]

    k = pl.program_id(1)

    @pl.when(k == 0)
    def _():
        acc_ref[...] = jnp.zeros_like(acc_ref)

    x = x_ref[...]                                    # (bb, ts, D0), input dtype
    if seq_len % seq_tile != 0:
        # Last chunk is padded by Pallas; mask padded tokens out of the sum.
        tok = jax.lax.broadcasted_iota(jnp.int32, (1, seq_tile, 1), 1)
        valid = tok < (seq_len - k * seq_tile)
        x = jnp.where(valid, x, jnp.zeros_like(x))
    # f32 accumulation without materializing a full f32 copy of the 3D tile.
    acc_ref[...] += jnp.sum(x, axis=1, dtype=jnp.float32)

    @pl.when(k == pl.num_programs(1) - 1)
    def _():
        y = acc_ref[...] * (1.0 / seq_len)            # mean pooling
        y = _project(y, w_refs, standardize_input)
        o_ref[...] = y.astype(o_ref.dtype)


def _pooled_kernel(x_ref, *refs, n_layers, standardize_input, is_cls):
    """grid = (batch_tiles,).  cls_pooler sees only a (bb, 1, D0) single-token
    block (~S x fewer DMA bytes); identity sees the (bb, D0) 2D input."""
    w_refs = refs[:n_layers]
    o_ref = refs[n_layers]
    if is_cls:
        y = x_ref[:, 0, :].astype(jnp.float32)
    else:
        y = x_ref[...].astype(jnp.float32)
    y = _project(y, w_refs, standardize_input)
    o_ref[...] = y.astype(o_ref.dtype)


# --------------------------- wrapper ------------------------------------------ #

def mlp_with_pooling_forward(x, weights_t, *, pooling_method=None,
                             standardize_input=True,
                             batch_tile=None, seq_tile=None):
    """Fused MLPWithPooling forward.

    x:          (B, S, D0) for 'mean_pooler' / 'cls_pooler', (B, D0) otherwise.
    weights_t:  list of PRE-TRANSPOSED fc weights, each (in_features, out_features)
                (transposed once at parameter-setup time, out of the hot path).
    """
    n_layers = len(weights_t)
    d_out = weights_t[-1].shape[1] if n_layers > 0 else x.shape[-1]
    if n_layers == 0:
        standardize_input = False                     # torch: projection = nn.Identity()
    B = x.shape[0]

    if pooling_method in ("mean_pooler", "cls_pooler"):
        if x.ndim != 3:
            raise ValueError(f"Tokens pooling expects a 3D tensor, got {x.ndim}D")
        S, D0 = x.shape[1], x.shape[2]
    else:
        if x.ndim != 2:
            # identity pooling with a 3D tensor would silently mis-normalize for a
            # (B, d_out) head output; reject explicitly.
            raise ValueError("identity pooling expects a 2D (batch, features) input")
        S, D0 = None, x.shape[1]

    weights_bytes = sum(int(w.size) * w.dtype.itemsize for w in weights_t)
    itemsize = x.dtype.itemsize

    # ---------------- batch tile ----------------
    if batch_tile is not None:
        bb = batch_tile
    elif B < 16:
        bb = B                                        # one tile == full dim (always legal)
    else:
        # >= 2 batch tiles so both v7x TensorCores get work ("parallel" axis),
        # 8-aligned, capped so blocks stay modest and many tiles pipeline.
        bb = min(256, _round_up(pl.cdiv(B, 2), 8))
    n_b = pl.cdiv(B, bb)

    out_shape = jax.ShapeDtypeStruct((B, d_out), x.dtype)
    kernel_kwargs = dict(n_layers=n_layers, standardize_input=standardize_input)

    if pooling_method == "mean_pooler":
        # ------ sequence chunk: keep 2x (double-buffered) input block in budget ------
        if seq_tile is not None:
            ts = seq_tile
        else:
            per_token = 2 * bb * D0 * itemsize
            budget = _VMEM_BUDGET - weights_bytes - 4 * bb * max(D0, d_out) * 4
            max_ts = max(8, budget // max(per_token, 1))
            ts = S if S <= max_ts else max(8, (max_ts // 8) * 8)
        n_k = pl.cdiv(S, ts)

        grid = (n_b, n_k)
        x_spec = pl.BlockSpec((bb, ts, D0), lambda i, k: (i, k, 0))
        w_specs = [pl.BlockSpec(w.shape, lambda i, k: (0, 0)) for w in weights_t]
        out_spec = pl.BlockSpec((bb, d_out), lambda i, k: (i, 0))
        scratch = [pltpu.VMEM((bb, D0), jnp.float32)]
        kernel = functools.partial(_mean_pool_kernel, seq_len=S, seq_tile=ts,
                                   **kernel_kwargs)
        semantics = ("parallel", "arbitrary")
        in_block_bytes = bb * ts * D0 * itemsize
        acc_bytes = bb * D0 * 4
    else:
        grid = (n_b,)
        if pooling_method == "cls_pooler":
            # Fetch only token 0 of each row: ~S x fewer HBM bytes.
            x_spec = pl.BlockSpec((bb, 1, D0), lambda i: (i, 0, 0))
        else:
            x_spec = pl.BlockSpec((bb, D0), lambda i: (i, 0))
        w_specs = [pl.BlockSpec(w.shape, lambda i: (0, 0)) for w in weights_t]
        out_spec = pl.BlockSpec((bb, d_out), lambda i: (i, 0))
        scratch = []
        kernel = functools.partial(_pooled_kernel,
                                   is_cls=(pooling_method == "cls_pooler"),
                                   **kernel_kwargs)
        semantics = ("parallel",)
        in_block_bytes = bb * D0 * itemsize
        acc_bytes = 0

    # Explicit VMEM limit: v5e's default scoped limit is only 16 MiB; sized from
    # the actual footprint and capped safely below v7x's 64 MiB physical VMEM.
    out_block_bytes = bb * d_out * itemsize
    vmem_needed = (2 * in_block_bytes + weights_bytes + acc_bytes
                   + 2 * out_block_bytes + (2 << 20))
    vmem_limit = int(min(60 << 20, max(vmem_needed, 16 << 20)))

    return pl.pallas_call(
        kernel,
        out_shape=out_shape,
        grid=grid,
        in_specs=[x_spec] + w_specs,
        out_specs=out_spec,
        scratch_shapes=scratch,
        compiler_params=pltpu.CompilerParams(
            dimension_semantics=semantics,
            vmem_limit_bytes=vmem_limit),
    )(x, *weights_t)


# --------------------------- reference (pure JAX) ----------------------------- #

def mlp_with_pooling_reference(x, weights, *, pooling_method=None,
                               standardize_input=True):
    """Pure-JAX reference with torch-layout weights (out_features, in_features)."""
    xf = x.astype(jnp.float32)
    if pooling_method == "mean_pooler":
        y = jnp.mean(xf, axis=1)
    elif pooling_method == "cls_pooler":
        y = xf[:, 0, :]
    else:
        y = xf
    if len(weights) == 0:
        return y.astype(x.dtype)
    if standardize_input:
        mean = jnp.mean(y, axis=-1, keepdims=True)
        var = jnp.mean((y - mean) ** 2, axis=-1, keepdims=True)
        y = (y - mean) / jnp.sqrt(var + LN_EPS)
    for w in weights:
        y = y @ w.T
        n = jnp.linalg.norm(y, axis=1, keepdims=True)
        y = y / jnp.maximum(n, 1e-12)
    return y.astype(x.dtype)


# --------------------------- main --------------------------------------------- #

if __name__ == "__main__":
    # MLPWithPooling(output_feature_sizes=[32, 64, 16], pooling_method='mean_pooler',
    #                output_attribute_to_use='last_hidden_state')
    output_feature_sizes = [32, 64, 16]
    key = jax.random.PRNGKey(0)
    kx, kx2, kw0, kw1 = jax.random.split(key, 4)

    # torch Linear layout (out_features, in_features), U(-1/sqrt(fan_in), 1/sqrt(fan_in)).
    weights = []
    for i, kw in enumerate((kw0, kw1)):
        fan_in, fan_out = output_feature_sizes[i], output_feature_sizes[i + 1]
        bound = 1.0 / float(fan_in) ** 0.5
        weights.append(jax.random.uniform(kw, (fan_out, fan_in), jnp.float32,
                                          -bound, bound))
    weights_t = [w.T for w in weights]      # pre-transposed ONCE at setup time

    def check(x, pooling, **kw):
        out = mlp_with_pooling_forward(x, weights_t, pooling_method=pooling,
                                       standardize_input=True, **kw)
        out = jax.block_until_ready(out)
        ref = mlp_with_pooling_reference(x, weights, pooling_method=pooling,
                                         standardize_input=True)
        assert out.shape == ref.shape
        assert jnp.allclose(out, ref, atol=1e-5, rtol=1e-5), f"mismatch ({pooling})"
        return out

    # Backbone output: (batch, seq, hidden) "last_hidden_state".
    batch, seq = 4, 8
    last_hidden_state = jax.random.normal(
        kx, (batch, seq, output_feature_sizes[0]), dtype=jnp.float32)

    class _BackboneOutput:   # simulate BaseModelOutputWithPooling + attrgetter (host-side glue)
        def __init__(self, lhs):
            self.last_hidden_state = lhs
            self.pooler_output = lhs[:, 0, :]

    bo = _BackboneOutput(last_hidden_state)

    # 1) mean_pooler on last_hidden_state (single-tile path).
    check(bo.last_hidden_state, "mean_pooler")

    # 2) mean_pooler with batch tiling + seq chunking + masked ragged tail.
    x2 = jax.random.normal(kx2, (16, 20, output_feature_sizes[0]), jnp.float32)
    check(x2, "mean_pooler", seq_tile=8)

    # 3) cls_pooler: only token 0 is DMA'd.
    check(bo.last_hidden_state, "cls_pooler")

    # 4) identity pooling on an already-pooled 2D tensor (pooler_output).
    check(bo.pooler_output, None)

    print("KERNEL_OK")
</pallas_src>

<mosaic_0001>
module attributes {stable_mosaic.version = 11 : i64} {
  func.func @_mean_pool_kernel(%arg0: i32, %arg1: i32, %arg2: memref<4x8x32xf32, #tpu.memory_space<vmem>>, %arg3: memref<32x64xf32, #tpu.memory_space<vmem>>, %arg4: memref<64x16xf32, #tpu.memory_space<vmem>>, %arg5: memref<4x16xf32, #tpu.memory_space<vmem>>, %arg6: memref<4x32xf32, #tpu.memory_space<vmem>>) attributes {dimension_semantics = [#tpu.dimension_semantics<parallel>, #tpu.dimension_semantics<arbitrary>], iteration_bounds = array<i64: 1, 1>, scalar_prefetch = 0 : i64, scratch_operands = 1 : i64, tpu.core_type = #tpu.core_type<tc>, window_params = [{transform_indices = @transform_0, window_bounds = array<i64: 4, 8, 32>}, {pipeline_mode = #tpu.pipeline_mode<synchronous>, transform_indices = @transform_1, window_bounds = array<i64: 32, 64>}, {pipeline_mode = #tpu.pipeline_mode<synchronous>, transform_indices = @transform_2, window_bounds = array<i64: 64, 16>}, {transform_indices = @transform_3, window_bounds = array<i64: 4, 16>}]} {
    %c0_i32 = arith.constant 0 : i32
    %0 = arith.cmpi eq, %arg1, %c0_i32 : i32
    %1 = arith.extui %0 : i1 to i32
    %c0_i32_0 = arith.constant 0 : i32
    %2 = arith.cmpi ne, %1, %c0_i32_0 : i32
    scf.if %2 {
      %cst_9 = arith.constant 0.000000e+00 : f32
      %11 = vector.broadcast %cst_9 : f32 to vector<4x32xf32>
      %c0_10 = arith.constant 0 : index
      %c0_11 = arith.constant 0 : index
      %12 = vector.load %arg6[%c0_10, %c0_11] : memref<4x32xf32, #tpu.memory_space<vmem>>, vector<4x32xf32>
      tpu.vector_store %arg6[%c0_10, %c0_11], %11 {strides = array<i32>} : memref<4x32xf32, #tpu.memory_space<vmem>>, vector<4x32xf32>,
    } else {
    }
    %c0 = arith.constant 0 : index
    %c0_1 = arith.constant 0 : index
    %c0_2 = arith.constant 0 : index
    %3 = vector.load %arg2[%c0, %c0_1, %c0_2] : memref<4x8x32xf32, #tpu.memory_space<vmem>>, vector<4x8x32xf32>
    %c0_3 = arith.constant 0 : index
    %c0_4 = arith.constant 0 : index
    %4 = vector.load %arg6[%c0_3, %c0_4] : memref<4x32xf32, #tpu.memory_space<vmem>>, vector<4x32xf32>
    %cst = arith.constant dense<0.000000e+00> : vector<4x32xf32>
    %5 = vector.multi_reduction <add>, %3, %cst [1] : vector<4x8x32xf32> to vector<4x32xf32>
    %6 = arith.addf %4, %5 : vector<4x32xf32>
    %c0_5 = arith.constant 0 : index
    %c0_6 = arith.constant 0 : index
    %7 = vector.load %arg6[%c0_5, %c0_6] : memref<4x32xf32, #tpu.memory_space<vmem>>, vector<4x32xf32>
    tpu.vector_store %arg6[%c0_5, %c0_6], %6 {strides = array<i32>} : memref<4x32xf32, #tpu.memory_space<vmem>>, vector<4x32xf32>,
    %c0_i32_7 = arith.constant 0 : i32
    %8 = arith.cmpi eq, %arg1, %c0_i32_7 : i32
    %9 = arith.extui %8 : i1 to i32
    %c0_i32_8 = arith.constant 0 : i32
    %10 = arith.cmpi ne, %9, %c0_i32_8 : i32
    scf.if %10 {
      %c0_9 = arith.constant 0 : index
      %c0_10 = arith.constant 0 : index
      %11 = vector.load %arg6[%c0_9, %c0_10] : memref<4x32xf32, #tpu.memory_space<vmem>>, vector<4x32xf32>
      %cst_11 = arith.constant 1.250000e-01 : f32
      %12 = vector.broadcast %cst_11 : f32 to vector<4x32xf32>
      %13 = arith.mulf %11, %12 : vector<4x32xf32>
      %cst_12 = arith.constant dense<0.000000e+00> : vector<4xf32>
      %14 = vector.multi_reduction <add>, %13, %cst_12 [1] : vector<4x32xf32> to vector<4xf32>
      %15 = vector.shape_cast %14 : vector<4xf32> to vector<4x1xf32>
      %cst_13 = arith.constant 3.200000e+01 : f32
      %16 = vector.broadcast %cst_13 : f32 to vector<4x1xf32>
      %17 = arith.divf %15, %16 : vector<4x1xf32>
      %18 = vector.broadcast %17 : vector<4x1xf32> to vector<4x32xf32>
      %19 = arith.subf %13, %18 : vector<4x32xf32>
      %20 = arith.mulf %19, %19 : vector<4x32xf32>
      %cst_14 = arith.constant dense<0.000000e+00> : vector<4xf32>
      %21 = vector.multi_reduction <add>, %20, %cst_14 [1] : vector<4x32xf32> to vector<4xf32>
      %22 = vector.shape_cast %21 : vector<4xf32> to vector<4x1xf32>
      %cst_15 = arith.constant 3.200000e+01 : f32
      %23 = vector.broadcast %cst_15 : f32 to vector<4x1xf32>
      %24 = arith.divf %22, %23 : vector<4x1xf32>
      %cst_16 = arith.constant 9.99999974E-6 : f32
      %25 = vector.broadcast %cst_16 : f32 to vector<4x1xf32>
      %26 = arith.addf %24, %25 : vector<4x1xf32>
      %27 = math.rsqrt %26 : vector<4x1xf32>
      %28 = vector.broadcast %27 : vector<4x1xf32> to vector<4x32xf32>
      %29 = arith.mulf %19, %28 : vector<4x32xf32>
      %c0_17 = arith.constant 0 : index
      %c0_18 = arith.constant 0 : index
      %30 = vector.load %arg3[%c0_17, %c0_18] : memref<32x64xf32, #tpu.memory_space<vmem>>, vector<32x64xf32>
      %cst_19 = arith.constant dense<0.000000e+00> : vector<4x64xf32>
      %31 = tpu.matmul %29, %30, %cst_19 {dimension_numbers = #tpu.dot_dimension_numbers<[1], [0], [0], [1], [0, 0, 1, 1], [], []>} : vector<4x32xf32>, vector<32x64xf32>, vector<4x64xf32> -> vector<4x64xf32>
      %32 = arith.mulf %31, %31 : vector<4x64xf32>
      %cst_20 = arith.constant dense<0.000000e+00> : vector<4xf32>
      %33 = vector.multi_reduction <add>, %32, %cst_20 [1] : vector<4x64xf32> to vector<4xf32>
      %34 = vector.shape_cast %33 : vector<4xf32> to vector<4x1xf32>
      %cst_21 = arith.constant 1.000000e-24 : f32
      %35 = vector.broadcast %cst_21 : f32 to vector<4x1xf32>
      %36 = arith.maximumf %34, %35 : vector<4x1xf32>
      %37 = math.rsqrt %36 : vector<4x1xf32>
      %38 = vector.broadcast %37 : vector<4x1xf32> to vector<4x64xf32>
      %39 = arith.mulf %31, %38 : vector<4x64xf32>
      %c0_22 = arith.constant 0 : index
      %c0_23 = arith.constant 0 : index
      %40 = vector.load %arg4[%c0_22, %c0_23] : memref<64x16xf32, #tpu.memory_space<vmem>>, vector<64x16xf32>
      %cst_24 = arith.constant dense<0.000000e+00> : vector<4x16xf32>
      %41 = tpu.matmul %39, %40, %cst_24 {dimension_numbers = #tpu.dot_dimension_numbers<[1], [0], [0], [1], [0, 0, 1, 1], [], []>} : vector<4x64xf32>, vector<64x16xf32>, vector<4x16xf32> -> vector<4x16xf32>
      %42 = arith.mulf %41, %41 : vector<4x16xf32>
      %cst_25 = arith.constant dense<0.000000e+00> : vector<4xf32>
      %43 = vector.multi_reduction <add>, %42, %cst_25 [1] : vector<4x16xf32> to vector<4xf32>
      %44 = vector.shape_cast %43 : vector<4xf32> to vector<4x1xf32>
      %cst_26 = arith.constant 1.000000e-24 : f32
      %45 = vector.broadcast %cst_26 : f32 to vector<4x1xf32>
      %46 = arith.maximumf %44, %45 : vector<4x1xf32>
      %47 = math.rsqrt %46 : vector<4x1xf32>
      %48 = vector.broadcast %47 : vector<4x1xf32> to vector<4x16xf32>
      %49 = arith.mulf %41, %48 : vector<4x16xf32>
      %c0_27 = arith.constant 0 : index
      %c0_28 = arith.constant 0 : index
      %50 = vector.load %arg5[%c0_27, %c0_28] : memref<4x16xf32, #tpu.memory_space<vmem>>, vector<4x16xf32>
      tpu.vector_store %arg5[%c0_27, %c0_28], %49 {strides = array<i32>} : memref<4x16xf32, #tpu.memory_space<vmem>>, vector<4x16xf32>,
    } else {
    }
    return
  }
  func.func @transform_0(%arg0: i32, %arg1: i32) -> (i32, i32, i32) {
    %c0_i32 = arith.constant 0 : i32
    %c0_i32_0 = arith.constant 0 : i32
    return %arg0, %arg1, %c0_i32 : i32, i32, i32
  }
  func.func @transform_1(%arg0: i32, %arg1: i32) -> (i32, i32) {
    %c0_i32 = arith.constant 0 : i32
    %c0_i32_0 = arith.constant 0 : i32
    %c0_i32_1 = arith.constant 0 : i32
    return %c0_i32, %c0_i32_0 : i32, i32
  }
  func.func @transform_2(%arg0: i32, %arg1: i32) -> (i32, i32) {
    %c0_i32 = arith.constant 0 : i32
    %c0_i32_0 = arith.constant 0 : i32
    %c0_i32_1 = arith.constant 0 : i32
    return %c0_i32, %c0_i32_0 : i32, i32
  }
  func.func @transform_3(%arg0: i32, %arg1: i32) -> (i32, i32) {
    %c0_i32 = arith.constant 0 : i32
    %c0_i32_0 = arith.constant 0 : i32
    return %arg0, %c0_i32 : i32, i32
  }
}

</mosaic_0001>

<llo_original>
// kernel: tpu_custom_call.1
$region0: #{tpu_custom_call.1}
  #allocation0 [shape = 'u32[]', space=smem, size = 0x4, offset = 0x4, fixed_abs, tag = 'smem constant byte address 0x4 - core index']
  #allocation1 [shape = 'u32[144,128]{1,0:T(1,128)}', space=vmem, size = 0x12000, scoped, tag = 'internal scratch']
  #allocation2 [shape = 'f32[4,32]{1,0:T(4,128)}', space=vmem, size = 0x800, scoped, tag = 'scratch operand']
  %s0 = inlined_call_operand.vmem [shape: f32[4,8,32], index: 0, kind: input, shape index: {}]
  %s1 = inlined_call_operand.vmem [shape: f32[32,64], index: 1, kind: input, shape index: {}]
  %s2 = inlined_call_operand.vmem [shape: f32[64,16], index: 2, kind: input, shape index: {}]
  %s3 = inlined_call_operand.hbm [shape: f32[4,16], index: 3, kind: output, shape index: {}]
  %s4 = sld [smem:[#allocation0]]
  $region30: #{tpu_custom_call.1} parent=0
    _
  %s6 = ssub.s32 1, %s4
  %s7 = scalar_select 0, %s6, %s4
  $region1: #{tpu_custom_call.1} parent=0
    #allocation3 [shape = 'u8[2048]{0}', space=vmem, size = 0x800, scoped, tag = 'output window, operand 0, single buffered']
    #allocation4 [shape = 's32[1]{0}', space=sflag, size = 0x4, scoped, tag = 'scoped memory for tpu_custom_call.1']
    %8 = vsyncpa [#allocation4], 0
    // Predicated region
    $region2: #{tpu_custom_call.1} parent=1 // pred_check
      _
    $region3: #{tpu_custom_call.1} parent=1 // pred_check_branch
      %10 = sbr.rel (0) target = $region5
    $region4: #{tpu_custom_call.1} parent=1 // pred_region
      _
    $region5: #{tpu_custom_call.1} parent=1 // pred_fallthru
      _
    // Predicated region
    $region6: #{tpu_custom_call.1} parent=1 // pred_check
      _
    $region7: #{tpu_custom_call.1} parent=1 // pred_check_branch
      %12 = sbr.rel (0) target = $region9
    $region8: #{tpu_custom_call.1} parent=1 // pred_region
      _
    $region9: #{tpu_custom_call.1} parent=1 // pred_fallthru
      _
    // Predicated region
    $region10: #{tpu_custom_call.1} parent=1 // pred_check
      _
    $region11: #{tpu_custom_call.1} parent=1 // pred_check_branch
      %14 = sbr.rel (0) target = $region13
    $region12: #{tpu_custom_call.1} parent=1 // pred_region
      _
    $region13: #{tpu_custom_call.1} parent=1 // pred_fallthru
      _
    %p15 = scmp.eq.s32.totalorder 0, 0
    // Predicated region
    $region14: #{tpu_custom_call.1} parent=1 // pred_check
      %p16 = pneg %p15
    $region15: #{tpu_custom_call.1} parent=1 // pred_check_branch
      %18 = sbr.rel (%p16) target = $region17
    $region16: #{tpu_custom_call.1} parent=1 // pred_region
      %vm19 = vcmask 257024
      %20 = vst.msk [vmem:[#allocation2] sm:$0xf] %vm19, 0.0
    $region17: #{tpu_custom_call.1} parent=1 // pred_fallthru
      _
    %v21 = vld [vmem:[%s0] sm:$0xff]
    %v22 = vld [vmem:[%s0 + $0x8] sm:$0xff]
    %v23 = vld [vmem:[%s0 + $0x10] sm:$0xff]
    %v24 = vld [vmem:[%s0 + $0x18] sm:$0xff]
    %v25 = vld [vmem:[#allocation2] sm:$0xf]
    %vm26 = vcmask 261120
    %v27 = vsel %vm26, %v21, 0.0
    %v28 = vrot.slane %v27, 4
    %v29 = vadd.f32 %v27, %v28
    %v30 = vrot.slane %v29, 2
    %v31 = vadd.f32 %v29, %v30
    %v32 = vrot.slane %v31, 1
    %v33 = vadd.f32 %v31, %v32
    %v34 = vsel %vm26, %v22, 0.0
    %v35 = vrot.slane %v34, 4
    %v36 = vadd.f32 %v34, %v35
    %v37 = vrot.slane %v36, 2
    %v38 = vadd.f32 %v36, %v37
    %v39 = vrot.slane %v38, 1
    %v40 = vadd.f32 %v38, %v39
    %v41 = vsel %vm26, %v23, 0.0
    %v42 = vrot.slane %v41, 4
    %v43 = vadd.f32 %v41, %v42
    %v44 = vrot.slane %v43, 2
    %v45 = vadd.f32 %v43, %v44
    %v46 = vrot.slane %v45, 1
    %v47 = vadd.f32 %v45, %v46
    %v48 = vsel %vm26, %v24, 0.0
    %v49 = vrot.slane %v48, 4
    %v50 = vadd.f32 %v48, %v49
    %v51 = vrot.slane %v50, 2
    %v52 = vadd.f32 %v50, %v51
    %v53 = vrot.slane %v52, 1
    %v54 = vadd.f32 %v52, %v53
    %vm59 = vcmask 1041409
    %v60 = vsel %vm59, %v40, %v33
    %vm61 = vcmask 1042434
    %v62 = vsel %vm61, %v47, %v60
    %vm63 = vcmask 1043459
    %v64 = vsel %vm63, %v54, %v62
    %v66 = vadd.f32 %v25, %v64
    %vm67 = vcmask 257024
    %68 = vst.msk [vmem:[#allocation2] sm:$0xf] %vm67, %v66
    // Predicated region
    $region18: #{tpu_custom_call.1} parent=1 // pred_check
      %p69 = pneg %p15
    $region19: #{tpu_custom_call.1} parent=1 // pred_check_branch
      %71 = sbr.rel (%p69) target = $region21
    $region20: #{tpu_custom_call.1} parent=1 // pred_region
      %v72 = vld [vmem:[#allocation2] sm:$0xf]
      %v73 = vmul.f32 %v72, 0.125
      %v74 = vsel %vm67, %v73, 0.0
      %75 = vadd.xlane.f32.xlu0 %v74
      %v76 = vpop.xlane.xlu0 %75
      %v77 = vrcp.pop 32.0
      %v78 = vmul.f32 %v76, %v77
      %v79 = vsub.f32 %v73, %v78
      %v80 = vmul.f32 %v79, %v79
      %v81 = vsel %vm67, %v80, 0.0
      %82 = vadd.xlane.f32.xlu0 %v81
      %v83 = vpop.xlane.xlu0 %82
      %v84 = vmul.f32 %v83, %v77
      %v85 = vadd.f32 %v84, 1e-05
      %v86 = vrsqrt.pop %v85
      %v87 = vmul.f32 %v79, %v86
      %v88 = vld [vmem:[%s1] sm:$0xff]
      %v89 = vld [vmem:[%s1 + $0x8] sm:$0xff]
      %v90 = vld [vmem:[%s1 + $0x10] sm:$0xff]
      %v91 = vld [vmem:[%s1 + $0x18] sm:$0xff]
      %v93 = vsel %vm26, %v87, 0
      %95 = vmatprep.subr.mxu0 0.0
      %96 = vmatpush1.msra.mxu0 0.0
      %97 = vmatprep.subr.mxu0 0.0
      %98 = vmatpush1.msra.mxu0 0.0
      %99 = vmatprep.subr.mxu0 0.0
      %100 = vmatpush1.msra.mxu0 0.0
      %101 = vmatprep.subr.mxu0 0.0
      %102 = vmatpush1.msra.mxu0 0.0
      %103 = vmatprep.subr.mxu0 0.0
      %104 = vmatpush1.msra.mxu0 0.0
      %105 = vmatprep.subr.mxu0 0.0
      %106 = vmatpush1.msra.mxu0 0.0
      %107 = vmatprep.subr.mxu0 0.0
      %108 = vmatpush1.msra.mxu0 0.0
      %109 = vmatprep.subr.mxu0 0.0
      %110 = vmatpush1.msra.mxu0 0.0
      %111 = vmatprep.subr.mxu0 0.0
      %112 = vmatpush1.msra.mxu0 0.0
      %113 = vmatprep.subr.mxu0 0.0
      %114 = vmatpush1.msra.mxu0 0.0
      %115 = vmatprep.subr.mxu0 0.0
      %116 = vmatpush1.msra.mxu0 0.0
      %117 = vmatprep.subr.mxu0 0.0
      %118 = vmatpush1.msra.mxu0 0.0
      %119 = vmatprep.subr.mxu0 0.0
      %120 = vmatpush1.msra.mxu0 %v91
      %121 = vmatprep.subr.mxu0 0.0
      %122 = vmatpush1.msra.mxu0 %v90
      %123 = vmatprep.subr.mxu0 0.0
      %124 = vmatpush1.msra.mxu0 %v89
      %125 = vmatprep.subr.mxu0 0.0
      %126 = vmatpush1.msra.mxu0 %v88
      %127 = vmatprep.subr.mxu0 0.0
      %128 = vmatpush2.msra.mxu0 0.0
      %129 = vmatprep.subr.mxu0 0.0
      %130 = vmatpush2.msra.mxu0 0.0
      %131 = vmatprep.subr.mxu0 0.0
      %132 = vmatpush2.msra.mxu0 0.0
      %133 = vmatprep.subr.mxu0 0.0
      %134 = vmatpush2.msra.mxu0 0.0
      %135 = vmatprep.subr.mxu0 0.0
      %136 = vmatpush2.msra.mxu0 0.0
      %137 = vmatprep.subr.mxu0 0.0
      %138 = vmatpush2.msra.mxu0 0.0
      %139 = vmatprep.subr.mxu0 0.0
      %140 = vmatpush2.msra.mxu0 0.0
      %141 = vmatprep.subr.mxu0 0.0
      %142 = vmatpush2.msra.mxu0 0.0
      %143 = vmatprep.subr.mxu0 0.0
      %144 = vmatpush2.msra.mxu0 0.0
      %145 = vmatprep.subr.mxu0 0.0
      %146 = vmatpush2.msra.mxu0 0.0
      %147 = vmatprep.subr.mxu0 0.0
      %148 = vmatpush2.msra.mxu0 0.0
      %149 = vmatprep.subr.mxu0 0.0
      %150 = vmatpush2.msra.mxu0 0.0
      %151 = vmatprep.subr.mxu0 0.0
      %152 = vmatpush2.msra.mxu0 0.0
      %153 = vmatprep.subr.mxu0 0.0
      %154 = vmatpush2.msra.mxu0 0.0
      %155 = vmatprep.subr.mxu0 0.0
      %156 = vmatpush2.msra.mxu0 0.0
      %157 = vmatprep.subr.mxu0 0.0
      %158 = vmatpush2.msra.mxu0 0.0
      %159 = vmatprep.mubr.f32.mxu0 0.0
      %160 = vmatmul.mubr.f32.gmra.mxu0 %v93
      %v161 = vpop.f32.mrf.mxu0
      %v162 = vadd.f32 0.0, %v161
      %v163 = vpop.f32.mrf.mxu0
      %164 = vdwg.mxu0
      %v165 = vmul.f32 %v162, %v162
      %vm166 = vcmask 519168
      %v167 = vsel %vm166, %v165, 0.0
      %168 = vadd.xlane.f32.xlu0 %v167
      %v169 = vpop.xlane.xlu0 %168
      %v170 = vmax.f32 %v169, 1e-24
      %v171 = vrsqrt.pop %v170
      %v172 = vmul.f32 %v162, %v171
      %v173 = vld [vmem:[%s2] sm:$0xff]
      %v174 = vld [vmem:[%s2 + $0x8] sm:$0xff]
      %v175 = vld [vmem:[%s2 + $0x10] sm:$0xff]
      %v176 = vld [vmem:[%s2 + $0x18] sm:$0xff]
      %v177 = vld [vmem:[%s2 + $0x20] sm:$0xff]
      %v178 = vld [vmem:[%s2 + $0x28] sm:$0xff]
      %v179 = vld [vmem:[%s2 + $0x30] sm:$0xff]
      %v180 = vld [vmem:[%s2 + $0x38] sm:$0xff]
      %vm181 = vcmask 523264
      %v183 = vsel %vm181, %v172, 0
      %185 = vmatprep.subr.mxu0 0.0
      %186 = vmatpush1.msra.mxu0 0.0
      %187 = vmatprep.subr.mxu0 0.0
      %188 = vmatpush1.msra.mxu0 0.0
      %189 = vmatprep.subr.mxu0 0.0
      %190 = vmatpush1.msra.mxu0 0.0
      %191 = vmatprep.subr.mxu0 0.0
      %192 = vmatpush1.msra.mxu0 0.0
      %193 = vmatprep.subr.mxu0 0.0
      %194 = vmatpush1.msra.mxu0 0.0
      %195 = vmatprep.subr.mxu0 0.0
      %196 = vmatpush1.msra.mxu0 0.0
      %197 = vmatprep.subr.mxu0 0.0
      %198 = vmatpush1.msra.mxu0 0.0
      %199 = vmatprep.subr.mxu0 0.0
      %200 = vmatpush1.msra.mxu0 0.0
      %201 = vmatprep.subr.mxu0 0.0
      %202 = vmatpush1.msra.mxu0 %v180
      %203 = vmatprep.subr.mxu0 0.0
      %204 = vmatpush1.msra.mxu0 %v179
      %205 = vmatprep.subr.mxu0 0.0
      %206 = vmatpush1.msra.mxu0 %v178
      %207 = vmatprep.subr.mxu0 0.0
      %208 = vmatpush1.msra.mxu0 %v177
      %209 = vmatprep.subr.mxu0 0.0
      %210 = vmatpush1.msra.mxu0 %v176
      %211 = vmatprep.subr.mxu0 0.0
      %212 = vmatpush1.msra.mxu0 %v175
      %213 = vmatprep.subr.mxu0 0.0
      %214 = vmatpush1.msra.mxu0 %v174
      %215 = vmatprep.subr.mxu0 0.0
      %216 = vmatpush1.msra.mxu0 %v173
      %217 = vmatprep.subr.mxu0 0.0
      %218 = vmatpush2.msra.mxu0 0.0
      %219 = vmatprep.subr.mxu0 0.0
      %220 = vmatpush2.msra.mxu0 0.0
      %221 = vmatprep.subr.mxu0 0.0
      %222 = vmatpush2.msra.mxu0 0.0
      %223 = vmatprep.subr.mxu0 0.0
      %224 = vmatpush2.msra.mxu0 0.0
      %225 = vmatprep.subr.mxu0 0.0
      %226 = vmatpush2.msra.mxu0 0.0
      %227 = vmatprep.subr.mxu0 0.0
      %228 = vmatpush2.msra.mxu0 0.0
      %229 = vmatprep.subr.mxu0 0.0
      %230 = vmatpush2.msra.mxu0 0.0
      %231 = vmatprep.subr.mxu0 0.0
      %232 = vmatpush2.msra.mxu0 0.0
      %233 = vmatprep.subr.mxu0 0.0
      %234 = vmatpush2.msra.mxu0 0.0
      %235 = vmatprep.subr.mxu0 0.0
      %236 = vmatpush2.msra.mxu0 0.0
      %237 = vmatprep.subr.mxu0 0.0
      %238 = vmatpush2.msra.mxu0 0.0
      %239 = vmatprep.subr.mxu0 0.0
      %240 = vmatpush2.msra.mxu0 0.0
      %241 = vmatprep.subr.mxu0 0.0
      %242 = vmatpush2.msra.mxu0 0.0
      %243 = vmatprep.subr.mxu0 0.0
      %244 = vmatpush2.msra.mxu0 0.0
      %245 = vmatprep.subr.mxu0 0.0
      %246 = vmatpush2.msra.mxu0 0.0
      %247 = vmatprep.subr.mxu0 0.0
      %248 = vmatpush2.msra.mxu0 0.0
      %249 = vmatprep.mubr.f32.mxu0 0.0
      %250 = vmatmul.mubr.f32.gmra.mxu0 %v183
      %v251 = vpop.f32.mrf.mxu0
      %v252 = vadd.f32 0.0, %v251
      %v253 = vpop.f32.mrf.mxu0
      %254 = vdwg.mxu0
      %v255 = vmul.f32 %v252, %v252
      %vm256 = vcmask 125952
      %v257 = vsel %vm256, %v255, 0.0
      %258 = vadd.xlane.f32.xlu0 %v257
      %v259 = vpop.xlane.xlu0 %258
      %v260 = vmax.f32 %v259, 1e-24
      %v261 = vrsqrt.pop %v260
      %v262 = vmul.f32 %v252, %v261
      %263 = vst.msk [vmem:[#allocation3] sm:$0xf] %vm256, %v262
    $region21: #{tpu_custom_call.1} parent=1 // pred_fallthru
      _
    // Predicated region
    $region22: #{tpu_custom_call.1} parent=1 // pred_check
      _
    $region23: #{tpu_custom_call.1} parent=1 // pred_check_branch
      %265 = sbr.rel (0) target = $region25
    $region24: #{tpu_custom_call.1} parent=1 // pred_region
      %s267 = ssub.s32 64, 64
      %268 = vsyncadd [#allocation4], %s267
      %s270 = sshll.u32 [#allocation3], 4
      %s271 = int_to_ptr.vmem [resolvable:$true] %s270
      %273 = dma.vmem_to_hbm [thread:$0]  %s271, 64, %s3, [#allocation4]
    $region25: #{tpu_custom_call.1} parent=1 // pred_fallthru
      _
    // Predicated region
    $region26: #{tpu_custom_call.1} parent=1 // pred_check
      _
    $region27: #{tpu_custom_call.1} parent=1 // pred_check_branch
      %275 = sbr.rel (0) target = $region29
    $region28: #{tpu_custom_call.1} parent=1 // pred_region
      %276 = dma.done [#allocation4], 64
    $region29: #{tpu_custom_call.1} parent=1 // pred_fallthru
      _
    %277 = vsyncpa [#allocation4], 1

</llo_original>
